<compile_context>
chip_gen: v5e
topology: v5e:2x2
jax: 0.10.0
libtpu: 0.0.40
codegen_flags: <defaults>
</compile_context>

<pallas_src>
import math

import jax
import jax.numpy as jnp
from jax.experimental import pallas as pl
from jax.experimental.pallas import tpu as pltpu


def _round_up(a, b):
    return (a + b - 1) // b * b


def _vmem_budget_bytes():
    """~40% of physical VMEM (generation-aware), with a safe fallback."""
    try:
        cap = int(pltpu.get_tpu_info().vmem_capacity_bytes)
    except Exception:
        cap = 64 << 20  # assume the smallest (v7x per-core) if the query fails
    return max(16 << 20, min((cap * 2) // 5, 56 << 20))


def _make_embed_kernel(bt):
    def kernel(patches_ref, w_ref, pos_ref, out_ref):
        # patches_ref: (bt, n_patches, K)       bf16 -- streamed per grid step
        # w_ref:       (K, C_out_p)             bf16 -- constant index map (resident)
        # pos_ref:     (n_patches, C_out_p)     f32  -- pos + conv bias (resident)
        # out_ref:     (bt, n_patches, C_out_p)
        w = w_ref[...]
        pos = pos_ref[...]
        for b in range(bt):  # static unroll; bt <= 64
            acc = jnp.dot(patches_ref[b], w, preferred_element_type=jnp.float32)
            out_ref[b] = (acc + pos).astype(out_ref.dtype)

    return kernel


def channel_embeddings(x, conv_w, conv_b, pos_emb, patch_size, *, out_dtype=None):
    """x: (B, C_in, H, W) NCHW.  conv_w: (C_out, C_in, P, P).  conv_b: (C_out,).
    pos_emb: (1, n_patches, C_out).  Returns (B, n_patches, C_out)."""
    B, C_in, H, W = x.shape
    P = patch_size
    C_out = conv_w.shape[0]
    Hp, Wp = H // P, W // P              # stride-P conv: trailing rows/cols dropped
    n_patches = Hp * Wp
    K = C_in * P * P
    out_dtype = jnp.dtype(x.dtype if out_dtype is None else out_dtype)

    # Lane width of the kernel output: exact C_out unless padding is nearly free.
    cp = _round_up(C_out, 128)
    if C_out % 128 == 0:
        C_out_p = C_out
    elif C_out >= 128 and cp * 4 <= C_out * 5:   # pad only if inflation <= 25%
        C_out_p = cp
    else:
        C_out_p = C_out                          # masked vst beats pad inflation

    # --- glue: crop + im2col + bf16 cast in one wrapper pass -------------------
    xc = x[:, :, : Hp * P, : Wp * P].astype(jnp.bfloat16)
    patches = xc.reshape(B, C_in, Hp, P, Wp, P)
    patches = jnp.transpose(patches, (0, 2, 4, 1, 3, 5)).reshape(B, n_patches, K)

    # Conv-as-matmul weight: (C_out, C_in*P*P) -> (K, C_out) in bf16.
    w_mat = conv_w.reshape(C_out, K).T.astype(jnp.bfloat16)
    if C_out_p != C_out:
        w_mat = jnp.pad(w_mat, ((0, 0), (0, C_out_p - C_out)))

    # Fold the conv bias into the position embedding (single f32 epilogue operand).
    pos_pb = pos_emb.reshape(n_patches, C_out).astype(jnp.float32) + conv_b.astype(
        jnp.float32
    )[None, :]
    if C_out_p != C_out:
        pos_pb = jnp.pad(pos_pb, ((0, 0), (0, C_out_p - C_out)))

    # --- batch-tile selection ---------------------------------------------------
    out_itemsize = jnp.dtype(out_dtype).itemsize

    def footprint(bt_):
        return (
            2 * bt_ * n_patches * K * 2                     # patches stream (dbl-buffered)
            + 2 * bt_ * n_patches * C_out_p * out_itemsize  # output stream (dbl-buffered)
            + 2 * K * C_out_p * 2                           # weights (resident; conservative 2 bufs)
            + 2 * n_patches * C_out_p * 4                   # pos+bias (resident; conservative)
        )

    budget = _vmem_budget_bytes()
    MAX_BT = 64  # bounds the unrolled in-kernel loop
    divisors = [d for d in range(1, B + 1) if B % d == 0]
    ok = [d for d in divisors if d <= MAX_BT and footprint(d) <= budget]
    # Prefer >= 2 grid steps so v7x's two TensorCores both get work and the
    # pipeline has ramp; single-step only when B == 1.
    pref = [d for d in ok if B // d >= 2]
    bt = max(pref) if pref else (max(ok) if ok else 1)
    n_tiles = B // bt
    vmem_limit = int(max(budget, min(2 * footprint(bt), 96 << 20)))

    # TODO(synk): if K is very large, add a K grid axis with an f32 VMEM
    # accumulator; for this module K = C_in*P*P fits a single resident stripe.
    # If xprof shows exposed DMA between steps, add
    # pipeline_mode=pl.Buffered(3) on the patches BlockSpec only.
    out = pl.pallas_call(
        _make_embed_kernel(bt),
        out_shape=jax.ShapeDtypeStruct((B, n_patches, C_out_p), out_dtype),
        grid_spec=pltpu.PrefetchScalarGridSpec(
            num_scalar_prefetch=0,
            grid=(n_tiles,),
            in_specs=[
                pl.BlockSpec((bt, n_patches, K), lambda i: (i, 0, 0)),     # patches (stream)
                pl.BlockSpec((K, C_out_p), lambda i: (0, 0)),              # weights (resident)
                pl.BlockSpec((n_patches, C_out_p), lambda i: (0, 0)),      # pos + bias (resident)
            ],
            out_specs=pl.BlockSpec((bt, n_patches, C_out_p), lambda i: (i, 0, 0)),
        ),
        compiler_params=pltpu.CompilerParams(
            dimension_semantics=("parallel",),
            vmem_limit_bytes=vmem_limit,
        ),
    )(patches, w_mat, pos_pb)

    if C_out_p != C_out:
        out = out[..., :C_out]

    # TODO(synk): training-mode dropout (stateful PRNG mask) not implemented;
    # eval-mode Dropout is the identity.
    return out


def _reference(x, conv_w, conv_b, pos_emb, patch_size):
    # Pure-JAX f32 reference of the PyTorch forward (eval mode).
    y = jax.lax.conv_general_dilated(
        x, conv_w,
        window_strides=(patch_size, patch_size),
        padding="VALID",
        dimension_numbers=("NCHW", "OIHW", "NCHW"),
    ) + conv_b[None, :, None, None]
    B, C, Hp, Wp = y.shape
    y = y.reshape(B, C, Hp * Wp)            # flatten(2)
    y = jnp.transpose(y, (0, 2, 1))         # transpose(-1, -2)
    return y + pos_emb                      # + position embeddings (dropout = id)


if __name__ == "__main__":
    # Small shapes consistent with the module:
    # batch=2, in_channels=4, img_size=16, patchsize=4 -> n_patches=16, hidden=4
    B, C_in, H, W = 2, 4, 16, 16
    P = 4
    n_patches = (H // P) * (W // P)
    C_out = C_in  # Conv2d(in_channels, in_channels, ...)

    key = jax.random.PRNGKey(0)
    kx, kw, kb, kp = jax.random.split(key, 4)
    x = jax.random.normal(kx, (B, C_in, H, W), dtype=jnp.float32)
    conv_w = jax.random.normal(kw, (C_out, C_in, P, P), dtype=jnp.float32) * 0.05
    conv_b = jax.random.normal(kb, (C_out,), dtype=jnp.float32) * 0.05
    # PyTorch inits position_embeddings to zeros; use deterministic random values
    # here so the add is exercised.
    pos_emb = jax.random.normal(kp, (1, n_patches, C_out), dtype=jnp.float32) * 0.02

    out = channel_embeddings(x, conv_w, conv_b, pos_emb, P)
    out = jax.block_until_ready(out)

    ref = _reference(x, conv_w, conv_b, pos_emb, P)
    assert out.shape == (B, n_patches, C_out), out.shape
    # bf16 streaming with f32 accumulation -> tolerance scales ~sqrt(K) vs f32 conv.
    K = C_in * P * P
    tol = 3e-2 + 5e-3 * math.sqrt(K)
    max_err = float(jnp.max(jnp.abs(out - ref)))
    assert max_err < tol, (max_err, tol)
    print("KERNEL_OK")
</pallas_src>

<mosaic_0001>
module attributes {stable_mosaic.version = 11 : i64} {
  func.func @kernel(%arg0: i32, %arg1: memref<1x16x64xbf16, #tpu.memory_space<vmem>>, %arg2: memref<64x4xbf16, #tpu.memory_space<vmem>>, %arg3: memref<16x4xf32, #tpu.memory_space<vmem>>, %arg4: memref<1x16x4xf32, #tpu.memory_space<vmem>>) attributes {dimension_semantics = [#tpu.dimension_semantics<parallel>], iteration_bounds = array<i64: 2>, scalar_prefetch = 0 : i64, scratch_operands = 0 : i64, tpu.core_type = #tpu.core_type<tc>, window_params = [{transform_indices = @transform_0, window_bounds = array<i64: 1, 16, 64>}, {pipeline_mode = #tpu.pipeline_mode<synchronous>, transform_indices = @transform_1, window_bounds = array<i64: 64, 4>}, {pipeline_mode = #tpu.pipeline_mode<synchronous>, transform_indices = @transform_2, window_bounds = array<i64: 16, 4>}, {transform_indices = @transform_3, window_bounds = array<i64: 1, 16, 4>}]} {
    %c0 = arith.constant 0 : index
    %c0_0 = arith.constant 0 : index
    %0 = vector.load %arg2[%c0, %c0_0] : memref<64x4xbf16, #tpu.memory_space<vmem>>, vector<64x4xbf16>
    %c0_1 = arith.constant 0 : index
    %c0_2 = arith.constant 0 : index
    %1 = vector.load %arg3[%c0_1, %c0_2] : memref<16x4xf32, #tpu.memory_space<vmem>>, vector<16x4xf32>
    %c0_3 = arith.constant 0 : index
    %c0_4 = arith.constant 0 : index
    %c0_5 = arith.constant 0 : index
    %2 = vector.load %arg1[%c0_3, %c0_4, %c0_5] : memref<1x16x64xbf16, #tpu.memory_space<vmem>>, vector<1x16x64xbf16>
    %3 = vector.shape_cast %2 : vector<1x16x64xbf16> to vector<16x64xbf16>
    %cst = arith.constant dense<0.000000e+00> : vector<16x4xf32>
    %4 = tpu.matmul %3, %0, %cst {dimension_numbers = #tpu.dot_dimension_numbers<[1], [0], [0], [1], [0, 0, 1, 1], [], []>} : vector<16x64xbf16>, vector<64x4xbf16>, vector<16x4xf32> -> vector<16x4xf32>
    %5 = arith.addf %4, %1 : vector<16x4xf32>
    %c0_6 = arith.constant 0 : index
    %c0_7 = arith.constant 0 : index
    %c0_8 = arith.constant 0 : index
    %6 = vector.load %arg4[%c0_6, %c0_7, %c0_8] : memref<1x16x4xf32, #tpu.memory_space<vmem>>, vector<1x16x4xf32>
    %7 = vector.shape_cast %6 : vector<1x16x4xf32> to vector<16x4xf32>
    %8 = vector.shape_cast %5 : vector<16x4xf32> to vector<1x16x4xf32>
    tpu.vector_store %arg4[%c0_6, %c0_7, %c0_8], %8 {strides = array<i32>} : memref<1x16x4xf32, #tpu.memory_space<vmem>>, vector<1x16x4xf32>,
    return
  }
  func.func @transform_0(%arg0: i32) -> (i32, i32, i32) {
    %c0_i32 = arith.constant 0 : i32
    %c0_i32_0 = arith.constant 0 : i32
    %c0_i32_1 = arith.constant 0 : i32
    return %arg0, %c0_i32, %c0_i32_0 : i32, i32, i32
  }
  func.func @transform_1(%arg0: i32) -> (i32, i32) {
    %c0_i32 = arith.constant 0 : i32
    %c0_i32_0 = arith.constant 0 : i32
    %c0_i32_1 = arith.constant 0 : i32
    return %c0_i32, %c0_i32_0 : i32, i32
  }
  func.func @transform_2(%arg0: i32) -> (i32, i32) {
    %c0_i32 = arith.constant 0 : i32
    %c0_i32_0 = arith.constant 0 : i32
    %c0_i32_1 = arith.constant 0 : i32
    return %c0_i32, %c0_i32_0 : i32, i32
  }
  func.func @transform_3(%arg0: i32) -> (i32, i32, i32) {
    %c0_i32 = arith.constant 0 : i32
    %c0_i32_0 = arith.constant 0 : i32
    %c0_i32_1 = arith.constant 0 : i32
    return %arg0, %c0_i32, %c0_i32_0 : i32, i32, i32
  }
}

</mosaic_0001>

<llo_original>
// kernel: tpu_custom_call.1
$region0: #{tpu_custom_call.1}
  #allocation0 [shape = 'u32[]', space=smem, size = 0x4, offset = 0x4, fixed_abs, tag = 'smem constant byte address 0x4 - core index']
  #allocation1 [shape = 'u32[72,128]{1,0:T(1,128)}', space=vmem, size = 0x9000, scoped, tag = 'internal scratch']
  %s0 = inlined_call_operand.vmem [shape: bf16[2,16,64], index: 0, kind: input, shape index: {}]
  %s1 = inlined_call_operand.vmem [shape: bf16[64,4], index: 1, kind: input, shape index: {}]
  %s2 = inlined_call_operand.vmem [shape: f32[16,4], index: 2, kind: input, shape index: {}]
  %s3 = inlined_call_operand.vmem [shape: f32[2,16,4], index: 3, kind: output, shape index: {}]
  %s4 = sld [smem:[#allocation0]]
  $region45: #{tpu_custom_call.1} parent=0
    _
  %s6 = ssub.s32 1, %s4
  %s7 = scalar_select 0, %s6, %s4
  loop: start=0, step=1, limit=4
  $region2: #{tpu_custom_call.1} parent=0 // loop_pre_header
    _
  $region3: #{tpu_custom_call.1} parent=0 // loop_header
    %s9 = sphi 0, %s13
    %p10 = scmp.ge.s32.totalorder %s9, 4
    %s19 = sphi 0, %s21
    %s22 = sphi 0, %s19
    %s23 = sphi 0, %s22
    %s39 = sphi 0, %s23
    %s43 = sphi 0, %s43
    %s45 = sphi 0, %s43
    %s46 = sphi 0, %s45
    %s60 = sphi 0, %s46
    %s64 = sphi 0, %s64
    %s66 = sphi 0, %s64
    %s67 = sphi 0, %s66
    %s81 = sphi 0, %s67
    %s87 = sphi 0, %s89
    %s90 = sphi 0, %s87
    %s91 = sphi 0, %s90
    %s107 = sphi 0, %s91
  $region4: #{tpu_custom_call.1} parent=0 // loop_header_branch
    %12 = sbr.rel (%p10) target = $region8
  $region5: #{tpu_custom_call.1} parent=0 // loop_body
    %s14 = ssub.s32 %s9, 1
    %s15 = ssub.s32 %s9, 2
    %s16 = sadd.s32 %s9, 1
    %s17 = ssub.s32 %s9, %s16
    %p18 = scmp.eq.s32.totalorder %s17, 0
    %s20 = sadd.s32 %s19, 1
    %s21 = scalar_select %p18, %s19, %s20
    %p24 = pneg %p18
    %p25 = scmp.eq.s32.totalorder %s9, 1
    %p26 = por %p24, %p25
    %p27 = scmp.ne.s32.totalorder %s19, %s22
    %p28 = scmp.eq.s32.totalorder %s9, 0
    %p29 = por %p27, %p28
    %p30 = scmp.ne.s32.totalorder %s19, %s22
    %p31 = scmp.eq.s32.totalorder %s14, 1
    %p32 = por %p30, %p31
    %p33 = scmp.ne.s32.totalorder %s22, %s23
    %p34 = scmp.eq.s32.totalorder %s14, 0
    %p35 = por %p33, %p34
    %p36 = scmp.ne.s32.totalorder %s22, %s23
    %p37 = scmp.eq.s32.totalorder %s15, 1
    %p38 = por %p36, %p37
    %p40 = scmp.ne.s32.totalorder %s23, %s39
    %p41 = scmp.eq.s32.totalorder %s15, 0
    %p42 = por %p40, %p41
    %s44 = sadd.s32 %s43, 1
    %p47 = scmp.eq.s32.totalorder %s9, 1
    %p48 = scmp.ne.s32.totalorder %s43, %s45
    %p49 = scmp.eq.s32.totalorder %s9, 0
    %p50 = por %p48, %p49
    %p51 = scmp.ne.s32.totalorder %s43, %s45
    %p52 = scmp.eq.s32.totalorder %s14, 1
    %p53 = por %p51, %p52
    %p54 = scmp.ne.s32.totalorder %s45, %s46
    %p55 = scmp.eq.s32.totalorder %s14, 0
    %p56 = por %p54, %p55
    %p57 = scmp.ne.s32.totalorder %s45, %s46
    %p58 = scmp.eq.s32.totalorder %s15, 1
    %p59 = por %p57, %p58
    %p61 = scmp.ne.s32.totalorder %s46, %s60
    %p62 = scmp.eq.s32.totalorder %s15, 0
    %p63 = por %p61, %p62
    %s65 = sadd.s32 %s64, 1
    %p68 = scmp.eq.s32.totalorder %s9, 1
    %p69 = scmp.ne.s32.totalorder %s64, %s66
    %p70 = scmp.eq.s32.totalorder %s9, 0
    %p71 = por %p69, %p70
    %p72 = scmp.ne.s32.totalorder %s64, %s66
    %p73 = scmp.eq.s32.totalorder %s14, 1
    %p74 = por %p72, %p73
    %p75 = scmp.ne.s32.totalorder %s66, %s67
    %p76 = scmp.eq.s32.totalorder %s14, 0
    %p77 = por %p75, %p76
    %p78 = scmp.ne.s32.totalorder %s66, %s67
    %p79 = scmp.eq.s32.totalorder %s15, 1
    %p80 = por %p78, %p79
    %p82 = scmp.ne.s32.totalorder %s67, %s81
    %p83 = scmp.eq.s32.totalorder %s15, 0
    %p84 = por %p82, %p83
    %s85 = ssub.s32 %s9, %s16
    %p86 = scmp.eq.s32.totalorder %s85, 0
    %s88 = sadd.s32 %s87, 1
    %s89 = scalar_select %p86, %s87, %s88
    %p92 = pneg %p86
    %p93 = scmp.eq.s32.totalorder %s9, 1
    %p94 = por %p92, %p93
    %p95 = scmp.ne.s32.totalorder %s87, %s90
    %p96 = scmp.eq.s32.totalorder %s9, 0
    %p97 = por %p95, %p96
    %p98 = scmp.ne.s32.totalorder %s87, %s90
    %p99 = scmp.eq.s32.totalorder %s14, 1
    %p100 = por %p98, %p99
    %p101 = scmp.ne.s32.totalorder %s90, %s91
    %p102 = scmp.eq.s32.totalorder %s14, 0
    %p103 = por %p101, %p102
    %p104 = scmp.ne.s32.totalorder %s90, %s91
    %p105 = scmp.eq.s32.totalorder %s15, 1
    %p106 = por %p104, %p105
    %p108 = scmp.ne.s32.totalorder %s91, %s107
    %p109 = scmp.eq.s32.totalorder %s15, 0
    %p110 = por %p108, %p109
    %p111 = scmp.le.s32.totalorder 1, %s9
    %p112 = scmp.lt.s32.totalorder %s9, 3
    %p113 = pnand %p111, %p112
    %p114 = pneg %p113
    // Predicated region
    $region9: #{tpu_custom_call.1} parent=5 // pred_check
      _
    $region10: #{tpu_custom_call.1} parent=5 // pred_check_branch
      %116 = sbr.rel (%p113) target = $region12
    $region11: #{tpu_custom_call.1} parent=5 // pred_region
      %s117 = ssub.s32 %s9, 1
      // Predicated region
      $region13: #{tpu_custom_call.1} parent=11 // pred_check
        %p118 = pneg %p56
      $region14: #{tpu_custom_call.1} parent=11 // pred_check_branch
        %120 = sbr.rel (%p118) target = $region16
      $region15: #{tpu_custom_call.1} parent=11 // pred_region
        _
      $region16: #{tpu_custom_call.1} parent=11 // pred_fallthru
        _
      // Predicated region
      $region17: #{tpu_custom_call.1} parent=11 // pred_check
        %p121 = pneg %p77
      $region18: #{tpu_custom_call.1} parent=11 // pred_check_branch
        %123 = sbr.rel (%p121) target = $region20
      $region19: #{tpu_custom_call.1} parent=11 // pred_region
        _
      $region20: #{tpu_custom_call.1} parent=11 // pred_fallthru
        _
    $region12: #{tpu_custom_call.1} parent=5 // pred_fallthru
      _
    %p124 = scmp.lt.s32.totalorder %s9, 2
    // Predicated region
    $region21: #{tpu_custom_call.1} parent=5 // pred_check
      %p125 = pneg %p124
    $region22: #{tpu_custom_call.1} parent=5 // pred_check_branch
      %127 = sbr.rel (%p125) target = $region24
    $region23: #{tpu_custom_call.1} parent=5 // pred_region
      // Predicated region
      $region25: #{tpu_custom_call.1} parent=23 // pred_check
        %p128 = pneg %p29
      $region26: #{tpu_custom_call.1} parent=23 // pred_check_branch
        %130 = sbr.rel (%p128) target = $region28
      $region27: #{tpu_custom_call.1} parent=23 // pred_region
        %p131 = scmp.lt.s32.totalorder %s9, 1
        %s132 = scalar_select %p131, %s9, 1
        %s133 = smul.addr %s132, 2
        %s134 = smul.addr %s133, 4
        %s135 = scalar_lea.vmem %s0, %s134
      $region28: #{tpu_custom_call.1} parent=23 // pred_fallthru
        _
    $region24: #{tpu_custom_call.1} parent=5 // pred_fallthru
      _
    %p136 = scmp.le.s32.totalorder 1, %s9
    %p137 = scmp.lt.s32.totalorder %s9, 3
    %p138 = pnand %p136, %p137
    %p139 = pneg %p138
    // Predicated region
    $region29: #{tpu_custom_call.1} parent=5 // pred_check
      _
    $region30: #{tpu_custom_call.1} parent=5 // pred_check_branch
      %141 = sbr.rel (%p138) target = $region32
    $region31: #{tpu_custom_call.1} parent=5 // pred_region
      %s142 = ssub.s32 %s9, 1
      %p143 = scmp.lt.s32.totalorder %s14, 1
      %s144 = scalar_select %p143, %s14, 1
      %s145 = smul.addr %s144, 2
      %s146 = smul.addr %s145, 4
      %s147 = scalar_lea.vmem %s0, %s146
      %p148 = pneg %p35
      %p149 = pneg %p32
      %p150 = pneg %p56
      %p151 = pneg %p53
      %p152 = pneg %p77
      %p153 = pneg %p74
      %p154 = pneg %p103
      %p155 = pneg %p100
      %p156 = scmp.lt.s32.totalorder %s14, 1
      %s157 = scalar_select %p156, %s14, 1
      %s158 = smul.addr %s157, 2
      %s159 = smul.addr %s158, 8
      %s160 = scalar_lea.vmem %s3, %s159
      %p161 = scmp.lt.s32.totalorder %s14, 1
      %s162 = scalar_select %p161, %s14, 1
      %s163 = smul.addr %s162, 2
      %s164 = smul.addr %s163, 4
      %s165 = scalar_lea.vmem %s0, %s164
      %p166 = scmp.lt.s32.totalorder %s14, 1
      %s167 = scalar_select %p166, %s14, 1
      %s168 = smul.addr %s167, 2
      %s169 = smul.addr %s168, 8
      %s170 = scalar_lea.vmem %s3, %s169
      %v172 = vld [vmem:[%s1] sm:$0xf]
      %v173 = vld [vmem:[%s1 + $0x4] sm:$0xf]
      %v174 = vld [vmem:[%s1 + $0x8] sm:$0xf]
      %v175 = vld [vmem:[%s1 + $0xc] sm:$0xf]
      %v176 = vld [vmem:[%s1 + $0x10] sm:$0xf]
      %v177 = vld [vmem:[%s1 + $0x14] sm:$0xf]
      %v178 = vld [vmem:[%s1 + $0x18] sm:$0xf]
      %v179 = vld [vmem:[%s1 + $0x1c] sm:$0xf]
      %v180 = vld [vmem:[%s2] sm:$0xff]
      %v181 = vld [vmem:[%s2 + $0x8] sm:$0xff]
      %v182 = vld [vmem:[%s165] sm:$0xf]
      %v183 = vld [vmem:[%s165 + $0x4] sm:$0xf]
      %v186 = vunpack.c.l.b16 %v182
      %v187 = vunpack.c.l.b16 %v183
      %v188 = vpack.c.b16 %v187, %v186
      %v197 = vunpack.c.l.b16 %v172
      %v198 = vunpack.c.l.b16 %v173
      %v199 = vunpack.c.l.b16 %v174
      %v200 = vunpack.c.l.b16 %v175
      %v201 = vunpack.c.l.b16 %v176
      %v202 = vunpack.c.l.b16 %v177
      %v203 = vunpack.c.l.b16 %v178
      %v204 = vunpack.c.l.b16 %v179
      %v205 = vpack.c.b16 %v198, %v197
      %v206 = vpack.c.b16 %v200, %v199
      %v207 = vpack.c.b16 %v202, %v201
      %v208 = vpack.c.b16 %v204, %v203
      %vm213 = vcmask 523264
      %v215 = vsel %vm213, %v188, 0
      %217 = vmatpush.bf16.msra.mxu0 0
      %218 = vmatpush.bf16.msra.mxu0 0
      %219 = vmatpush.bf16.msra.mxu0 0
      %220 = vmatpush.bf16.msra.mxu0 0
      %221 = vmatpush.bf16.msra.mxu0 %v208
      %222 = vmatpush.bf16.msra.mxu0 %v207
      %223 = vmatpush.bf16.msra.mxu0 %v206
      %224 = vmatpush.bf16.msra.mxu0 %v205
      %225 = vmatmul.bf16.gmra.mxu0 %v215
      %v226 = vpop.f32.mrf.mxu0
      %v227 = vadd.f32 %v180, %v226
      %v228 = vpop.f32.mrf.mxu0
      %v229 = vadd.f32 %v181, %v228
      %230 = vdwg.mxu0
      %vm231 = vcmask 31744
      %232 = vst.msk [vmem:[%s170] sm:$0xff] %vm231, %v227
      %233 = vst.msk [vmem:[%s170 + $0x8] sm:$0xff] %vm231, %v229
      %p234 = scmp.lt.s32.totalorder %s14, 1
      %s235 = scalar_select %p234, %s14, 1
      %s236 = smul.addr %s235, 2
      %s237 = smul.addr %s236, 8
      %s238 = scalar_lea.vmem %s3, %s237
      // Predicated region
      $region33: #{tpu_custom_call.1} parent=31 // pred_check
        %p239 = pneg %p100
      $region34: #{tpu_custom_call.1} parent=31 // pred_check_branch
        %241 = sbr.rel (%p239) target = $region36
      $region35: #{tpu_custom_call.1} parent=31 // pred_region
        _
      $region36: #{tpu_custom_call.1} parent=31 // pred_fallthru
        _
    $region32: #{tpu_custom_call.1} parent=5 // pred_fallthru
      _
    %p242 = scmp.le.s32.totalorder 2, %s9
    // Predicated region
    $region37: #{tpu_custom_call.1} parent=5 // pred_check
      %p243 = pneg %p242
    $region38: #{tpu_custom_call.1} parent=5 // pred_check_branch
      %245 = sbr.rel (%p243) target = $region40
    $region39: #{tpu_custom_call.1} parent=5 // pred_region
      %s246 = ssub.s32 %s9, 2
      // Predicated region
      $region41: #{tpu_custom_call.1} parent=39 // pred_check
        %p247 = pneg %p106
      $region42: #{tpu_custom_call.1} parent=39 // pred_check_branch
        %249 = sbr.rel (%p247) target = $region44
      $region43: #{tpu_custom_call.1} parent=39 // pred_region
        %p250 = scmp.lt.s32.totalorder %s15, 1
        %s251 = scalar_select %p250, %s15, 1
        %s252 = smul.addr %s251, 2
        %s253 = smul.addr %s252, 8
        %s254 = scalar_lea.vmem %s3, %s253
      $region44: #{tpu_custom_call.1} parent=39 // pred_fallthru
        _
    $region40: #{tpu_custom_call.1} parent=5 // pred_fallthru
      _
  $region6: #{tpu_custom_call.1} parent=0 // loop_footer
    %s13 = sadd.s32 1, %s9
  $region7: #{tpu_custom_call.1} parent=0 // loop_footer_branch
    %8 = sbr.rel target = $region3
  $region8: #{tpu_custom_call.1} parent=0 // loop_exit
    _

</llo_original>
